<compile_context>
chip_gen: v6e
topology: v6e:2x2x1
jax: 0.10.0
libtpu: 0.0.40
codegen_flags: <defaults>
</compile_context>

<pallas_src>
import jax
import jax.numpy as jnp
from jax.experimental import pallas as pl
from jax.experimental.pallas import tpu as pltpu

PADDING_IDX = 2
# Fill value for padded logits: exp(-1e30 - m) == 0 for any real m, yet stays finite
# (no inf/NaN arithmetic); representable in bf16 as well.
_NEG_FILL = -1e30


def _round_up(a, b):
    return ((a + b - 1) // b) * b


def _loss_kernel(target_ref, x_ref, out_ref, m_sc, l_sc, p_sc):
    """Grid: (row_tile i ["parallel"], vocab_tile kv ["arbitrary", innermost])."""
    kv = pl.program_id(1)
    nv = pl.num_programs(1)

    @pl.when(kv == 0)
    def _():
        m_sc[...] = jnp.full_like(m_sc, _NEG_FILL)
        l_sc[...] = jnp.zeros_like(l_sc)
        p_sc[...] = jnp.zeros_like(p_sc)

    # Upcast in-register: the HBM stream stays in the caller's dtype (bf16 friendly),
    # all logsumexp arithmetic is f32.
    xf = x_ref[...].astype(jnp.float32)                       # (tile_n, tile_v)
    tile_v = xf.shape[-1]
    tgt = target_ref[...]                                     # (tile_n, 1) int32

    # Online (streaming) logsumexp across vocab tiles.
    m_prev = m_sc[...]
    m_new = jnp.maximum(m_prev, jnp.max(xf, axis=-1, keepdims=True))
    xs = xf - m_new                                           # feeds the exp-sum
    l_sc[...] = (l_sc[...] * jnp.exp(m_prev - m_new)
                 + jnp.sum(jnp.exp(xs), axis=-1, keepdims=True))
    m_sc[...] = m_new

    # Fused gather of x[i, target[i]]: compare a (1, tile_v) lane-iota row (offset by
    # kv*tile_v) against the (tile_n, 1) target column and reduce.  Exactly one column
    # matches across all vocab tiles, so accumulating the absolute value is exact.
    # TODO(synk): out-of-range (invalid) targets other than PADDING_IDX contribute lse
    # here, while the PyTorch reference's scatter_ would be undefined/error for them.
    col = jax.lax.broadcasted_iota(jnp.int32, (1, tile_v), 1) + kv * tile_v
    p_sc[...] += jnp.sum(jnp.where(col == tgt, xf, 0.0), axis=-1, keepdims=True)

    @pl.when(kv == nv - 1)
    def _():
        not_pad = (tgt != PADDING_IDX).astype(jnp.float32)    # (tile_n, 1)
        lse = m_sc[...] + jnp.log(l_sc[...])
        out_ref[...] = not_pad * (lse - p_sc[...])


def translation_loss(x, target, *, tile_n=None, tile_v=None, vmem_limit_bytes=None):
    """x: (N, V) float logits, target: (N,) int token ids. Returns scalar float32 loss."""
    N, V = x.shape
    itemsize = jnp.dtype(x.dtype).itemsize
    # Sublane packing: 8 rows/vreg for 32-bit, 16 for bf16/fp16, 32 for 8-bit types.
    row_align = max(8, 32 // max(1, itemsize))

    # Generation-aware VMEM budget (v5e/v6e: 128 MiB/core, v7x: 64 MiB/core).
    vmem_cap = 64 * 1024 * 1024
    try:
        cap = getattr(pltpu.get_tpu_info(), "vmem_capacity_bytes", None)
        if cap:
            vmem_cap = int(cap)
    except Exception:  # conservative fallback (e.g. interpret mode)
        pass
    small_vmem = vmem_cap <= (64 << 20)
    # Work-block budget in *f32 elements* so bf16 inputs (upcast in-register) don't
    # overshoot the f32 temporary footprint on v7x.
    target_f32_block = (8 << 20) if small_vmem else (16 << 20)
    elems_budget = target_f32_block // 4
    max_tile_n = 1024 if small_vmem else 2048

    n_pad_min = _round_up(max(N, 1), row_align)

    if tile_n is None or tile_v is None:
        if row_align * V <= elems_budget:
            # Common case: whole vocab row per block; as many rows as fit the budget.
            tv = V
            tn = min(max_tile_n, n_pad_min,
                     max(row_align, (elems_budget // V) // row_align * row_align))
        else:
            # Huge vocab: tile the vocab axis, reduce with the online logsumexp path.
            tn = min(128, n_pad_min)
            tv = max(128, (elems_budget // tn) // 128 * 128)
        if tile_n is None:
            tile_n = tn
        if tile_v is None:
            tile_v = tv

    tile_n = max(row_align, min(_round_up(tile_n, row_align), n_pad_min))
    if tile_v >= V:
        tile_v = V                       # full-extent block (lane dim = full array dim)
    else:
        tile_v = max(128, _round_up(tile_v, 128))
        if tile_v >= V:
            tile_v = V

    # Megacore: keep >=2 row tiles so the "parallel" axis shards across both
    # TensorCores on v7x (one extra ~0.35us grid step elsewhere; negligible).
    if n_pad_min >= 2 * row_align:
        tile_n = min(tile_n, _round_up((n_pad_min + 1) // 2, row_align))

    num_row_tiles = _round_up(N, tile_n) // tile_n
    n_pad = num_row_tiles * tile_n
    num_v_tiles = _round_up(V, tile_v) // tile_v
    v_pad = num_v_tiles * tile_v

    if n_pad != N or v_pad != V:
        # Padded logits get a huge-negative fill (zero softmax mass, finite math);
        # padded rows are additionally masked via PADDING_IDX targets -> exactly 0.
        x = jnp.pad(x, ((0, n_pad - N), (0, v_pad - V)), constant_values=_NEG_FILL)
    if n_pad != N:
        target = jnp.pad(target, (0, n_pad - N), constant_values=PADDING_IDX)
    target_col = target.astype(jnp.int32).reshape(n_pad, 1)

    if vmem_limit_bytes is None:
        blk_in = tile_n * tile_v * itemsize     # double-buffered HBM stream block
        blk_f32 = tile_n * tile_v * 4           # in-kernel f32 temporaries (xf/xs/exp)
        col_buf = tile_n * 128 * 4              # (tile_n, 1) buffers pad to 128 lanes
        need = 2 * blk_in + 3 * blk_f32 + 8 * col_buf + (2 << 20)
        vmem_limit_bytes = int(min(max(need, 32 << 20), int(0.85 * vmem_cap)))

    cost = pl.CostEstimate(
        flops=6 * n_pad * v_pad,
        transcendentals=n_pad * v_pad,
        bytes_accessed=n_pad * v_pad * itemsize + 2 * n_pad * 4,
    )

    per_row = pl.pallas_call(
        _loss_kernel,
        out_shape=jax.ShapeDtypeStruct((n_pad, 1), jnp.float32),
        grid_spec=pltpu.PrefetchScalarGridSpec(
            num_scalar_prefetch=0,
            grid=(num_row_tiles, num_v_tiles),
            in_specs=[
                pl.BlockSpec((tile_n, 1), lambda i, kv: (i, 0)),
                pl.BlockSpec((tile_n, tile_v), lambda i, kv: (i, kv)),
            ],
            out_specs=pl.BlockSpec((tile_n, 1), lambda i, kv: (i, 0)),
            scratch_shapes=[
                pltpu.VMEM((tile_n, 1), jnp.float32),   # running max  m
                pltpu.VMEM((tile_n, 1), jnp.float32),   # running sum  l
                pltpu.VMEM((tile_n, 1), jnp.float32),   # picked x[i, target[i]]
            ],
        ),
        compiler_params=pltpu.CompilerParams(
            dimension_semantics=("parallel", "arbitrary"),
            vmem_limit_bytes=vmem_limit_bytes,
        ),
        cost_estimate=cost,
    )(target_col, x)

    # Padded rows contribute exactly 0, so summing the whole padded vector is exact.
    return jnp.sum(per_row)


def _reference_loss(x, target):
    logp = jax.nn.log_softmax(x.astype(jnp.float32), axis=-1)
    one_hot = jax.nn.one_hot(target, x.shape[-1], dtype=jnp.float32)
    one_hot = jnp.where((target == PADDING_IDX)[:, None], 0.0, one_hot)
    return -jnp.sum(one_hot * logp)


if __name__ == "__main__":
    key = jax.random.PRNGKey(0)
    k1, k2, k3, k4, k5, k6 = jax.random.split(key, 6)

    # Case 1: small aligned shape, auto tiling (whole-vocab blocks, >=2 row tiles).
    N1, V1 = 16, 128
    x1 = jax.random.normal(k1, (N1, V1), dtype=jnp.float32)
    t1 = jax.random.randint(k2, (N1,), 0, V1, dtype=jnp.int32)
    t1 = t1.at[3].set(PADDING_IDX).at[10].set(PADDING_IDX)   # exercise masking path
    loss1 = translation_loss(x1, t1)
    jax.block_until_ready(loss1)
    ref1 = _reference_loss(x1, t1)
    assert jnp.allclose(loss1, ref1, rtol=1e-5, atol=1e-5), (loss1, ref1)

    # Case 2: non-divisible N, multi row-tile grid (row padding + parallel axis).
    N2, V2 = 43, 256
    x2 = jax.random.normal(k3, (N2, V2), dtype=jnp.float32)
    t2 = jax.random.randint(k4, (N2,), 0, V2, dtype=jnp.int32)
    t2 = t2.at[0].set(PADDING_IDX).at[20].set(PADDING_IDX)
    loss2 = translation_loss(x2, t2, tile_n=16)
    jax.block_until_ready(loss2)
    ref2 = _reference_loss(x2, t2)
    assert jnp.allclose(loss2, ref2, rtol=1e-5, atol=1e-5), (loss2, ref2)

    # Case 3: forced vocab tiling (online-logsumexp path + vocab padding), bf16 stream.
    N3, V3 = 24, 640
    x3 = jax.random.normal(k5, (N3, V3), dtype=jnp.float32).astype(jnp.bfloat16)
    t3 = jax.random.randint(k6, (N3,), 0, V3, dtype=jnp.int32)
    t3 = t3.at[5].set(PADDING_IDX).at[17].set(PADDING_IDX)
    loss3 = translation_loss(x3, t3, tile_n=16, tile_v=256)
    jax.block_until_ready(loss3)
    ref3 = _reference_loss(x3, t3)
    assert jnp.allclose(loss3, ref3, rtol=1e-2, atol=1e-2), (loss3, ref3)

    print("KERNEL_OK")
</pallas_src>

<mosaic_0001>
module attributes {stable_mosaic.version = 11 : i64} {
  func.func @_loss_kernel(%arg0: i32, %arg1: i32, %arg2: memref<8x1xi32, #tpu.memory_space<vmem>>, %arg3: memref<8x128xf32, #tpu.memory_space<vmem>>, %arg4: memref<8x1xf32, #tpu.memory_space<vmem>>, %arg5: memref<8x1xf32, #tpu.memory_space<vmem>>, %arg6: memref<8x1xf32, #tpu.memory_space<vmem>>, %arg7: memref<8x1xf32, #tpu.memory_space<vmem>>) attributes {dimension_semantics = [#tpu.dimension_semantics<parallel>, #tpu.dimension_semantics<arbitrary>], iteration_bounds = array<i64: 2, 1>, scalar_prefetch = 0 : i64, scratch_operands = 3 : i64, tpu.core_type = #tpu.core_type<tc>, window_params = [{transform_indices = @transform_0, window_bounds = array<i64: 8, 1>}, {transform_indices = @transform_1, window_bounds = array<i64: 8, 128>}, {transform_indices = @transform_2, window_bounds = array<i64: 8, 1>}]} {
    %c0_i32 = arith.constant 0 : i32
    %0 = arith.cmpi eq, %arg1, %c0_i32 : i32
    %1 = arith.extui %0 : i1 to i32
    %c0_i32_0 = arith.constant 0 : i32
    %2 = arith.cmpi ne, %1, %c0_i32_0 : i32
    scf.if %2 {
      %cst_21 = arith.constant -1.000000e+30 : f32
      %38 = vector.broadcast %cst_21 : f32 to vector<8x1xf32>
      %c0_22 = arith.constant 0 : index
      %c0_23 = arith.constant 0 : index
      %39 = vector.load %arg5[%c0_22, %c0_23] : memref<8x1xf32, #tpu.memory_space<vmem>>, vector<8x1xf32>
      tpu.vector_store %arg5[%c0_22, %c0_23], %38 {strides = array<i32>} : memref<8x1xf32, #tpu.memory_space<vmem>>, vector<8x1xf32>,
      %cst_24 = arith.constant 0.000000e+00 : f32
      %40 = vector.broadcast %cst_24 : f32 to vector<8x1xf32>
      %c0_25 = arith.constant 0 : index
      %c0_26 = arith.constant 0 : index
      %41 = vector.load %arg6[%c0_25, %c0_26] : memref<8x1xf32, #tpu.memory_space<vmem>>, vector<8x1xf32>
      tpu.vector_store %arg6[%c0_25, %c0_26], %40 {strides = array<i32>} : memref<8x1xf32, #tpu.memory_space<vmem>>, vector<8x1xf32>,
      %cst_27 = arith.constant 0.000000e+00 : f32
      %42 = vector.broadcast %cst_27 : f32 to vector<8x1xf32>
      %c0_28 = arith.constant 0 : index
      %c0_29 = arith.constant 0 : index
      %43 = vector.load %arg7[%c0_28, %c0_29] : memref<8x1xf32, #tpu.memory_space<vmem>>, vector<8x1xf32>
      tpu.vector_store %arg7[%c0_28, %c0_29], %42 {strides = array<i32>} : memref<8x1xf32, #tpu.memory_space<vmem>>, vector<8x1xf32>,
    } else {
    }
    %c0 = arith.constant 0 : index
    %c0_1 = arith.constant 0 : index
    %3 = vector.load %arg3[%c0, %c0_1] : memref<8x128xf32, #tpu.memory_space<vmem>>, vector<8x128xf32>
    %c0_2 = arith.constant 0 : index
    %c0_3 = arith.constant 0 : index
    %4 = vector.load %arg2[%c0_2, %c0_3] : memref<8x1xi32, #tpu.memory_space<vmem>>, vector<8x1xi32>
    %c0_4 = arith.constant 0 : index
    %c0_5 = arith.constant 0 : index
    %5 = vector.load %arg5[%c0_4, %c0_5] : memref<8x1xf32, #tpu.memory_space<vmem>>, vector<8x1xf32>
    %cst = arith.constant dense<0xFF800000> : vector<8xf32>
    %6 = vector.multi_reduction <maximumf>, %3, %cst [1] : vector<8x128xf32> to vector<8xf32>
    %7 = vector.shape_cast %6 : vector<8xf32> to vector<8x1xf32>
    %8 = arith.maximumf %5, %7 : vector<8x1xf32>
    %9 = vector.broadcast %8 : vector<8x1xf32> to vector<8x128xf32>
    %10 = arith.subf %3, %9 : vector<8x128xf32>
    %c0_6 = arith.constant 0 : index
    %c0_7 = arith.constant 0 : index
    %11 = vector.load %arg6[%c0_6, %c0_7] : memref<8x1xf32, #tpu.memory_space<vmem>>, vector<8x1xf32>
    %12 = arith.subf %5, %8 : vector<8x1xf32>
    %13 = math.exp %12 : vector<8x1xf32>
    %14 = arith.mulf %11, %13 : vector<8x1xf32>
    %15 = math.exp %10 : vector<8x128xf32>
    %cst_8 = arith.constant dense<0.000000e+00> : vector<8xf32>
    %16 = vector.multi_reduction <add>, %15, %cst_8 [1] : vector<8x128xf32> to vector<8xf32>
    %17 = vector.shape_cast %16 : vector<8xf32> to vector<8x1xf32>
    %18 = arith.addf %14, %17 : vector<8x1xf32>
    %c0_9 = arith.constant 0 : index
    %c0_10 = arith.constant 0 : index
    %19 = vector.load %arg6[%c0_9, %c0_10] : memref<8x1xf32, #tpu.memory_space<vmem>>, vector<8x1xf32>
    tpu.vector_store %arg6[%c0_9, %c0_10], %18 {strides = array<i32>} : memref<8x1xf32, #tpu.memory_space<vmem>>, vector<8x1xf32>,
    %c0_11 = arith.constant 0 : index
    %c0_12 = arith.constant 0 : index
    %20 = vector.load %arg5[%c0_11, %c0_12] : memref<8x1xf32, #tpu.memory_space<vmem>>, vector<8x1xf32>
    tpu.vector_store %arg5[%c0_11, %c0_12], %8 {strides = array<i32>} : memref<8x1xf32, #tpu.memory_space<vmem>>, vector<8x1xf32>,
    %21 = tpu.iota {dimensions = array<i32: 1>} : vector<1x128xi32>
    %c128_i32 = arith.constant 128 : i32
    %22 = arith.muli %arg1, %c128_i32 : i32
    %23 = vector.broadcast %22 : i32 to vector<1x128xi32>
    %24 = arith.addi %21, %23 : vector<1x128xi32>
    %c0_13 = arith.constant 0 : index
    %c0_14 = arith.constant 0 : index
    %25 = vector.load %arg7[%c0_13, %c0_14] : memref<8x1xf32, #tpu.memory_space<vmem>>, vector<8x1xf32>
    %26 = vector.broadcast %24 : vector<1x128xi32> to vector<8x128xi32>
    %27 = vector.broadcast %4 : vector<8x1xi32> to vector<8x128xi32>
    %28 = arith.cmpi eq, %26, %27 : vector<8x128xi32>
    %cst_15 = arith.constant 0.000000e+00 : f32
    %29 = vector.broadcast %cst_15 : f32 to vector<8x128xf32>
    %30 = arith.select %28, %3, %29 : vector<8x128xi1>, vector<8x128xf32>
    %cst_16 = arith.constant dense<0.000000e+00> : vector<8xf32>
    %31 = vector.multi_reduction <add>, %30, %cst_16 [1] : vector<8x128xf32> to vector<8xf32>
    %32 = vector.shape_cast %31 : vector<8xf32> to vector<8x1xf32>
    %33 = arith.addf %25, %32 : vector<8x1xf32>
    %c0_17 = arith.constant 0 : index
    %c0_18 = arith.constant 0 : index
    %34 = vector.load %arg7[%c0_17, %c0_18] : memref<8x1xf32, #tpu.memory_space<vmem>>, vector<8x1xf32>
    tpu.vector_store %arg7[%c0_17, %c0_18], %33 {strides = array<i32>} : memref<8x1xf32, #tpu.memory_space<vmem>>, vector<8x1xf32>,
    %c0_i32_19 = arith.constant 0 : i32
    %35 = arith.cmpi eq, %arg1, %c0_i32_19 : i32
    %36 = arith.extui %35 : i1 to i32
    %c0_i32_20 = arith.constant 0 : i32
    %37 = arith.cmpi ne, %36, %c0_i32_20 : i32
    scf.if %37 {
      %c2_i32 = arith.constant 2 : i32
      %38 = vector.broadcast %c2_i32 : i32 to vector<8x1xi32>
      %39 = arith.cmpi ne, %4, %38 : vector<8x1xi32>
      %40 = arith.extui %39 : vector<8x1xi1> to vector<8x1xi32>
      %41 = arith.sitofp %40 : vector<8x1xi32> to vector<8x1xf32>
      %c0_21 = arith.constant 0 : index
      %c0_22 = arith.constant 0 : index
      %42 = vector.load %arg5[%c0_21, %c0_22] : memref<8x1xf32, #tpu.memory_space<vmem>>, vector<8x1xf32>
      %c0_23 = arith.constant 0 : index
      %c0_24 = arith.constant 0 : index
      %43 = vector.load %arg6[%c0_23, %c0_24] : memref<8x1xf32, #tpu.memory_space<vmem>>, vector<8x1xf32>
      %44 = math.log %43 : vector<8x1xf32>
      %45 = arith.addf %42, %44 : vector<8x1xf32>
      %c0_25 = arith.constant 0 : index
      %c0_26 = arith.constant 0 : index
      %46 = vector.load %arg7[%c0_25, %c0_26] : memref<8x1xf32, #tpu.memory_space<vmem>>, vector<8x1xf32>
      %47 = arith.subf %45, %46 : vector<8x1xf32>
      %48 = arith.mulf %41, %47 : vector<8x1xf32>
      %c0_27 = arith.constant 0 : index
      %c0_28 = arith.constant 0 : index
      %49 = vector.load %arg4[%c0_27, %c0_28] : memref<8x1xf32, #tpu.memory_space<vmem>>, vector<8x1xf32>
      tpu.vector_store %arg4[%c0_27, %c0_28], %48 {strides = array<i32>} : memref<8x1xf32, #tpu.memory_space<vmem>>, vector<8x1xf32>,
    } else {
    }
    return
  }
  func.func @transform_0(%arg0: i32, %arg1: i32) -> (i32, i32) {
    %c0_i32 = arith.constant 0 : i32
    %c0_i32_0 = arith.constant 0 : i32
    return %arg0, %c0_i32 : i32, i32
  }
  func.func @transform_1(%arg0: i32, %arg1: i32) -> (i32, i32) {
    %c0_i32 = arith.constant 0 : i32
    return %arg0, %arg1 : i32, i32
  }
  func.func @transform_2(%arg0: i32, %arg1: i32) -> (i32, i32) {
    %c0_i32 = arith.constant 0 : i32
    %c0_i32_0 = arith.constant 0 : i32
    return %arg0, %c0_i32 : i32, i32
  }
}

</mosaic_0001>

<llo_original>
// kernel: tpu_custom_call.1
$region0: #{tpu_custom_call.1}
  #allocation0 [shape = 'u32[]', space=smem, size = 0x4, offset = 0x4, fixed_abs, tag = 'smem constant byte address 0x4 - core index']
  #allocation1 [shape = 'u32[144,128]{1,0:T(1,128)}', space=vmem, size = 0x12000, scoped, tag = 'internal scratch']
  #allocation2 [shape = 'f32[8,1]{1,0:T(8,128)}', space=vmem, size = 0x1000, scoped, tag = 'scratch operand']
  #allocation3 [shape = 'f32[8,1]{1,0:T(8,128)}', space=vmem, size = 0x1000, scoped, tag = 'scratch operand']
  #allocation4 [shape = 'f32[8,1]{1,0:T(8,128)}', space=vmem, size = 0x1000, scoped, tag = 'scratch operand']
  %s0 = inlined_call_operand.vmem [shape: s32[16,1], index: 0, kind: input, shape index: {}]
  %s1 = inlined_call_operand.vmem [shape: f32[16,128], index: 1, kind: input, shape index: {}]
  %s2 = inlined_call_operand.vmem [shape: f32[16,1], index: 2, kind: output, shape index: {}]
  %s3 = sld [smem:[#allocation0]]
  $region49: #{tpu_custom_call.1} parent=0
    _
  %s5 = ssub.s32 1, %s3
  %s6 = scalar_select 0, %s5, %s3
  loop: start=0, step=1, limit=4
  $region2: #{tpu_custom_call.1} parent=0 // loop_pre_header
    _
  $region3: #{tpu_custom_call.1} parent=0 // loop_header
    %s8 = sphi 0, %s12
    %p9 = scmp.ge.s32.totalorder %s8, 4
    %s15 = sphi 0, %s27
    %s16 = sphi 0, %s23
    %s17 = sphi 0, %s15
    %s18 = sphi 0, %s16
    %s19 = sphi 0, %s17
    %s20 = sphi 0, %s18
    %s30 = sphi 0, %s32
    %s33 = sphi 0, %s30
    %s34 = sphi 0, %s33
    %s50 = sphi 0, %s34
    %s58 = sphi 0, %s60
    %s61 = sphi 0, %s58
    %s62 = sphi 0, %s61
    %s78 = sphi 0, %s62
    %s84 = sphi 0, %s86
    %s87 = sphi 0, %s84
    %s88 = sphi 0, %s87
    %s104 = sphi 0, %s88
  $region4: #{tpu_custom_call.1} parent=0 // loop_header_branch
    %11 = sbr.rel (%p9) target = $region8
  $region5: #{tpu_custom_call.1} parent=0 // loop_body
    %s13 = ssub.s32 %s8, 1
    %s14 = ssub.s32 %s8, 2
    %s21 = sadd.s32 1, %s16
    %p22 = scmp.ge.s32.totalorder %s21, 1
    %s23 = scalar_select %p22, 0, %s21
    %s24 = sadd.s32 1, %s15
    %s25 = scalar_select %p22, %s24, %s15
    %p26 = scmp.ge.s32.totalorder %s25, 2
    %s27 = scalar_select %p26, 0, %s25
    %s28 = ssub.s32 %s15, %s27
    %p29 = scmp.eq.s32.totalorder %s28, 0
    %s31 = sadd.s32 %s30, 1
    %s32 = scalar_select %p29, %s30, %s31
    %p35 = pneg %p29
    %p36 = scmp.eq.s32.totalorder %s8, 1
    %p37 = por %p35, %p36
    %p38 = scmp.ne.s32.totalorder %s30, %s33
    %p39 = scmp.eq.s32.totalorder %s8, 0
    %p40 = por %p38, %p39
    %p41 = scmp.ne.s32.totalorder %s30, %s33
    %p42 = scmp.eq.s32.totalorder %s13, 1
    %p43 = por %p41, %p42
    %p44 = scmp.ne.s32.totalorder %s33, %s34
    %p45 = scmp.eq.s32.totalorder %s13, 0
    %p46 = por %p44, %p45
    %p47 = scmp.ne.s32.totalorder %s33, %s34
    %p48 = scmp.eq.s32.totalorder %s14, 1
    %p49 = por %p47, %p48
    %p51 = scmp.ne.s32.totalorder %s34, %s50
    %p52 = scmp.eq.s32.totalorder %s14, 0
    %p53 = por %p51, %p52
    %s54 = ssub.s32 %s15, %s27
    %s55 = ssub.s32 %s16, %s23
    %s56 = sor.u32 %s54, %s55
    %p57 = scmp.eq.s32.totalorder %s56, 0
    %s59 = sadd.s32 %s58, 1
    %s60 = scalar_select %p57, %s58, %s59
    %p63 = pneg %p57
    %p64 = scmp.eq.s32.totalorder %s8, 1
    %p65 = por %p63, %p64
    %p66 = scmp.ne.s32.totalorder %s58, %s61
    %p67 = scmp.eq.s32.totalorder %s8, 0
    %p68 = por %p66, %p67
    %p69 = scmp.ne.s32.totalorder %s58, %s61
    %p70 = scmp.eq.s32.totalorder %s13, 1
    %p71 = por %p69, %p70
    %p72 = scmp.ne.s32.totalorder %s61, %s62
    %p73 = scmp.eq.s32.totalorder %s13, 0
    %p74 = por %p72, %p73
    %p75 = scmp.ne.s32.totalorder %s61, %s62
    %p76 = scmp.eq.s32.totalorder %s14, 1
    %p77 = por %p75, %p76
    %p79 = scmp.ne.s32.totalorder %s62, %s78
    %p80 = scmp.eq.s32.totalorder %s14, 0
    %p81 = por %p79, %p80
    %s82 = ssub.s32 %s15, %s27
    %p83 = scmp.eq.s32.totalorder %s82, 0
    %s85 = sadd.s32 %s84, 1
    %s86 = scalar_select %p83, %s84, %s85
    %p89 = pneg %p83
    %p90 = scmp.eq.s32.totalorder %s8, 1
    %p91 = por %p89, %p90
    %p92 = scmp.ne.s32.totalorder %s84, %s87
    %p93 = scmp.eq.s32.totalorder %s8, 0
    %p94 = por %p92, %p93
    %p95 = scmp.ne.s32.totalorder %s84, %s87
    %p96 = scmp.eq.s32.totalorder %s13, 1
    %p97 = por %p95, %p96
    %p98 = scmp.ne.s32.totalorder %s87, %s88
    %p99 = scmp.eq.s32.totalorder %s13, 0
    %p100 = por %p98, %p99
    %p101 = scmp.ne.s32.totalorder %s87, %s88
    %p102 = scmp.eq.s32.totalorder %s14, 1
    %p103 = por %p101, %p102
    %p105 = scmp.ne.s32.totalorder %s88, %s104
    %p106 = scmp.eq.s32.totalorder %s14, 0
    %p107 = por %p105, %p106
    %p108 = scmp.le.s32.totalorder 1, %s8
    %p109 = scmp.lt.s32.totalorder %s8, 3
    %p110 = pnand %p108, %p109
    %p111 = pneg %p110
    // Predicated region
    $region9: #{tpu_custom_call.1} parent=5 // pred_check
      _
    $region10: #{tpu_custom_call.1} parent=5 // pred_check_branch
      %113 = sbr.rel (%p110) target = $region12
    $region11: #{tpu_custom_call.1} parent=5 // pred_region
      %s114 = ssub.s32 %s8, 1
    $region12: #{tpu_custom_call.1} parent=5 // pred_fallthru
      _
    %p115 = scmp.lt.s32.totalorder %s8, 2
    // Predicated region
    $region13: #{tpu_custom_call.1} parent=5 // pred_check
      %p116 = pneg %p115
    $region14: #{tpu_custom_call.1} parent=5 // pred_check_branch
      %118 = sbr.rel (%p116) target = $region16
    $region15: #{tpu_custom_call.1} parent=5 // pred_region
      // Predicated region
      $region17: #{tpu_custom_call.1} parent=15 // pred_check
        %p119 = pneg %p40
      $region18: #{tpu_custom_call.1} parent=15 // pred_check_branch
        %121 = sbr.rel (%p119) target = $region20
      $region19: #{tpu_custom_call.1} parent=15 // pred_region
        %p122 = scmp.lt.s32.totalorder %s15, 1
        %s123 = scalar_select %p122, %s15, 1
        %s124 = smul.addr %s123, 8
        %s125 = scalar_lea.vmem %s0, %s124
      $region20: #{tpu_custom_call.1} parent=15 // pred_fallthru
        _
      // Predicated region
      $region21: #{tpu_custom_call.1} parent=15 // pred_check
        %p126 = pneg %p68
      $region22: #{tpu_custom_call.1} parent=15 // pred_check_branch
        %128 = sbr.rel (%p126) target = $region24
      $region23: #{tpu_custom_call.1} parent=15 // pred_region
        %p129 = scmp.lt.s32.totalorder %s15, 1
        %s130 = scalar_select %p129, %s15, 1
        %p131 = scmp.lt.s32.totalorder %s16, 0
        %s132 = scalar_select %p131, %s16, 0
        %s133 = sadd.s32 %s132, %s130
        %s134 = smul.addr %s133, 8
        %s135 = scalar_lea.vmem %s1, %s134
      $region24: #{tpu_custom_call.1} parent=15 // pred_fallthru
        _
    $region16: #{tpu_custom_call.1} parent=5 // pred_fallthru
      _
    %p136 = scmp.le.s32.totalorder 1, %s8
    %p137 = scmp.lt.s32.totalorder %s8, 3
    %p138 = pnand %p136, %p137
    %p139 = pneg %p138
    // Predicated region
    $region25: #{tpu_custom_call.1} parent=5 // pred_check
      _
    $region26: #{tpu_custom_call.1} parent=5 // pred_check_branch
      %141 = sbr.rel (%p138) target = $region28
    $region27: #{tpu_custom_call.1} parent=5 // pred_region
      %s142 = ssub.s32 %s8, 1
      %p143 = scmp.lt.s32.totalorder %s17, 1
      %s144 = scalar_select %p143, %s17, 1
      %s145 = smul.addr %s144, 8
      %s146 = scalar_lea.vmem %s0, %s145
      %p147 = pneg %p46
      %p148 = pneg %p43
      %p149 = scmp.lt.s32.totalorder %s17, 1
      %s150 = scalar_select %p149, %s17, 1
      %p151 = scmp.lt.s32.totalorder %s18, 0
      %s152 = scalar_select %p151, %s18, 0
      %s153 = sadd.s32 %s152, %s150
      %s154 = smul.addr %s153, 8
      %s155 = scalar_lea.vmem %s1, %s154
      %p156 = pneg %p74
      %p157 = pneg %p71
      %p158 = pneg %p100
      %p159 = pneg %p97
      %p160 = scmp.lt.s32.totalorder %s17, 1
      %s161 = scalar_select %p160, %s17, 1
      %s162 = smul.addr %s161, 8
      %s163 = scalar_lea.vmem %s2, %s162
      %p164 = scmp.lt.s32.totalorder %s17, 1
      %s165 = scalar_select %p164, %s17, 1
      %s166 = smul.addr %s165, 8
      %s167 = scalar_lea.vmem %s0, %s166
      %p168 = scmp.lt.s32.totalorder %s17, 1
      %s169 = scalar_select %p168, %s17, 1
      %p170 = scmp.lt.s32.totalorder %s18, 0
      %s171 = scalar_select %p170, %s18, 0
      %s172 = sadd.s32 %s171, %s169
      %s173 = smul.addr %s172, 8
      %s174 = scalar_lea.vmem %s1, %s173
      %p175 = scmp.lt.s32.totalorder %s17, 1
      %s176 = scalar_select %p175, %s17, 1
      %s177 = smul.addr %s176, 8
      %s178 = scalar_lea.vmem %s2, %s177
      %p179 = scmp.eq.s32.totalorder %s18, 0
      // Predicated region
      $region29: #{tpu_custom_call.1} parent=27 // pred_check
        %p180 = pneg %p179
      $region30: #{tpu_custom_call.1} parent=27 // pred_check_branch
        %182 = sbr.rel (%p180) target = $region32
      $region31: #{tpu_custom_call.1} parent=27 // pred_region
        %vm183 = vcmask 7168
        %184 = vst.msk [vmem:[#allocation2] sm:$0xff] %vm183, -1e+30
        %185 = vst.msk [vmem:[#allocation3] sm:$0xff] %vm183, 0.0
        %186 = vst.msk [vmem:[#allocation4] sm:$0xff] %vm183, 0.0
      $region32: #{tpu_custom_call.1} parent=27 // pred_fallthru
        _
      %v187 = vld [vmem:[%s174] sm:$0xff]
      %v188 = vld [vmem:[%s167] sm:$0xff]
      %v189 = vld [vmem:[#allocation2] sm:$0xff]
      %190 = vmax.xlane.f32.xlu0 %v187
      %v191 = vpop.xlane.xlu0 %190
      %v192 = vmax.f32 %v189, %v191
      %194 = vset.pattern.permute.xlu0 0
      %195 = vperm.xlu0 %194, %v192
      %v196 = vpop.permute.xlu0 %195
      %v198 = vsub.f32 %v187, %v196
      %v199 = vld [vmem:[#allocation3] sm:$0xff]
      %v200 = vsub.f32 %v189, %v192
      %v201 = vmul.f32 %v200, 1.442695
      %v202 = vpow.pop %v201
      %v203 = vmul.f32 %v199, %v202
      %v204 = vmul.f32 %v198, 1.442695
      %v205 = vpow.pop %v204
      %206 = vadd.xlane.f32.xlu0 %v205
      %v207 = vpop.xlane.xlu0 %206
      %v208 = vadd.f32 %v203, %v207
      %vm209 = vcmask 7168
      %210 = vst.msk [vmem:[#allocation3] sm:$0xff] %vm209, %v208
      %211 = vst.msk [vmem:[#allocation2] sm:$0xff] %vm209, %v192
      %v212 = vlaneseq
      %v213 = vand.u32 %v212, 127
      %s214 = smul.u32 %s18, 128
      %v215 = vstv %s214
      %v216 = vadd.s32 %v213, %v215
      %v217 = vld [vmem:[#allocation4] sm:$0xff]
      %218 = vset.pattern.permute.xlu0 0
      %219 = vperm.xlu0 %218, %v188
      %v220 = vpop.permute.xlu0 %219
      %vm221 = vcmp.eq.s32.totalorder %v216, %v220
      %v222 = vsel %vm221, %v187, 0.0
      %223 = vadd.xlane.f32.xlu0 %v222
      %v224 = vpop.xlane.xlu0 %223
      %v225 = vadd.f32 %v217, %v224
      %226 = vst.msk [vmem:[#allocation4] sm:$0xff] %vm209, %v225
      // Predicated region
      $region33: #{tpu_custom_call.1} parent=27 // pred_check
        %p227 = pneg %p179
      $region34: #{tpu_custom_call.1} parent=27 // pred_check_branch
        %229 = sbr.rel (%p227) target = $region36
      $region35: #{tpu_custom_call.1} parent=27 // pred_region
        %vm230 = vcmp.ne.s32.totalorder %v188, 2
        %v231 = vsel %vm230, 1, 0
        %v232 = vcvt.s32.f32 %v231
        %v233 = vld [vmem:[#allocation2] sm:$0xff]
        %v234 = vld [vmem:[#allocation3] sm:$0xff]
        %v235 = vlog2.pop %v234
        %v236 = vmul.f32 %v235, 0.6931472
        %v237 = vadd.f32 %v233, %v236
        %v238 = vld [vmem:[#allocation4] sm:$0xff]
        %v239 = vsub.f32 %v237, %v238
        %v240 = vmul.f32 %v232, %v239
        %241 = vst.msk [vmem:[%s178] sm:$0xff] %vm209, %v240
      $region36: #{tpu_custom_call.1} parent=27 // pred_fallthru
        _
      %p242 = scmp.lt.s32.totalorder %s17, 1
      %s243 = scalar_select %p242, %s17, 1
      %s244 = smul.addr %s243, 8
      %s245 = scalar_lea.vmem %s2, %s244
      // Predicated region
      $region37: #{tpu_custom_call.1} parent=27 // pred_check
        %p246 = pneg %p97
      $region38: #{tpu_custom_call.1} parent=27 // pred_check_branch
        %248 = sbr.rel (%p246) target = $region40
      $region39: #{tpu_custom_call.1} parent=27 // pred_region
        _
      $region40: #{tpu_custom_call.1} parent=27 // pred_fallthru
        _
    $region28: #{tpu_custom_call.1} parent=5 // pred_fallthru
      _
    %p249 = scmp.le.s32.totalorder 2, %s8
    // Predicated region
    $region41: #{tpu_custom_call.1} parent=5 // pred_check
      %p250 = pneg %p249
    $region42: #{tpu_custom_call.1} parent=5 // pred_check_branch
      %252 = sbr.rel (%p250) target = $region44
    $region43: #{tpu_custom_call.1} parent=5 // pred_region
      %s253 = ssub.s32 %s8, 2
      // Predicated region
      $region45: #{tpu_custom_call.1} parent=43 // pred_check
        %p254 = pneg %p103
      $region46: #{tpu_custom_call.1} parent=43 // pred_check_branch
        %256 = sbr.rel (%p254) target = $region48
      $region47: #{tpu_custom_call.1} parent=43 // pred_region
        %p257 = scmp.lt.s32.totalorder %s19, 1
        %s258 = scalar_select %p257, %s19, 1
        %s259 = smul.addr %s258, 8
        %s260 = scalar_lea.vmem %s2, %s259
      $region48: #{tpu_custom_call.1} parent=43 // pred_fallthru
        _
    $region44: #{tpu_custom_call.1} parent=5 // pred_fallthru
      _
  $region6: #{tpu_custom_call.1} parent=0 // loop_footer
    %s12 = sadd.s32 1, %s8
  $region7: #{tpu_custom_call.1} parent=0 // loop_footer_branch
    %7 = sbr.rel target = $region3
  $region8: #{tpu_custom_call.1} parent=0 // loop_exit
    _

</llo_original>
